<compile_context>
chip_gen: v7x
topology: tpu7x:2x2x1
jax: 0.10.0
libtpu: 0.0.40
codegen_flags: <defaults>
</compile_context>

<pallas_src>
import jax
import jax.numpy as jnp
from jax.experimental import pallas as pl
from jax.experimental.pallas import tpu as pltpu


def _copy_kernel(x_ref, o_ref):
    # Pure pass-through copy of the current tile. Input and output tiles share
    # the same element coordinates (the truncation is expressed purely via the
    # output array extent + grid over the output columns), so the body is a
    # single lane-dense load/store that stays fully hidden under the DMAs.
    o_ref[...] = x_ref[...]


def _round_up(n: int, m: int) -> int:
    return ((n + m - 1) // m) * m


def _sublane_multiple(dtype) -> int:
    # Sub-32-bit dtypes pack along sublanes; keep the row tile aligned to the
    # packing so the copy stays a pure DMA (no repacking in VMEM).
    itemsize = jnp.dtype(dtype).itemsize
    if itemsize >= 4:
        return 8
    if itemsize == 2:
        return 16
    return 32


class SamePad:
    """Pallas equivalent of the PyTorch SamePad module."""

    def __init__(self, kernel_size: int, causal: bool = False):
        if causal:
            self.remove = kernel_size - 1
        else:
            self.remove = 1 if kernel_size % 2 == 0 else 0

    def __call__(self, x: jax.Array) -> jax.Array:
        # x: (B, C, T)
        if self.remove <= 0:
            # Identity: skip the kernel entirely (no HBM traffic).
            return x

        B, C, T = x.shape
        t_out = T - self.remove
        if t_out <= 0:
            raise ValueError(
                f"SamePad: remove={self.remove} >= time dim T={T}; "
                "output would be empty."
            )

        rows = B * C
        # NOTE: this reshape is a free view only for a contiguous (B, C, T)
        # layout; a transposed caller layout would make XLA insert a copy
        # outside the kernel (correct, just not free).
        x2d = x.reshape(rows, T)

        itemsize = jnp.dtype(x.dtype).itemsize
        sub = _sublane_multiple(x.dtype)

        # ---- byte-budgeted, lane-dense tiling ------------------------------
        # ~4 MiB per input tile (same working set in bytes for every dtype):
        # measured copy roofline is ~85-86% of HBM BW at 1-4 MiB tiles and
        # falls off sharply below ~1 MiB.
        target_bytes = 4 << 20
        # Grow the lane (last) dim first; collapse the column grid axis when
        # t_out fits so only one masked ragged tail block exists per row-block.
        col_tile = min(_round_up(t_out, 128), 8192)
        row_budget = max(1, target_bytes // (col_tile * itemsize))
        row_tile = min(_round_up(row_budget, sub), _round_up(rows, sub))

        col_blocks = pl.cdiv(t_out, col_tile)
        # Megacore (v7x has 2 TCs): if the grid would collapse to a single
        # block, split rows into >= 2 blocks so both cores get work.
        if col_blocks == 1 and rows > sub:
            row_tile = min(row_tile, _round_up(pl.cdiv(rows, 2), sub))

        row_blocks = pl.cdiv(rows, row_tile)
        grid = (row_blocks, col_blocks)  # columns innermost -> coalesced writes

        # Scoped VMEM sized to the actual tiles: (in + out) x 2 buffers plus
        # headroom. Floor 16 MiB (v5e default), cap 40 MiB (fits v7x's 64 MiB
        # physical VMEM per TC with room to spare).
        tile_bytes = row_tile * col_tile * itemsize
        vmem_limit = min(max(4 * tile_bytes + (4 << 20), 16 << 20), 40 << 20)

        y2d = pl.pallas_call(
            _copy_kernel,
            out_shape=jax.ShapeDtypeStruct((rows, t_out), x.dtype),
            grid=grid,
            in_specs=[pl.BlockSpec((row_tile, col_tile), lambda i, j: (i, j))],
            out_specs=pl.BlockSpec((row_tile, col_tile), lambda i, j: (i, j)),
            compiler_params=pltpu.CompilerParams(
                dimension_semantics=("parallel", "parallel"),
                vmem_limit_bytes=vmem_limit,
            ),
        )(x2d)

        return y2d.reshape(B, C, t_out)


if __name__ == "__main__":
    key = jax.random.PRNGKey(0)

    B, C, T = 2, 8, 16
    x = jax.random.normal(key, (B, C, T), dtype=jnp.float32)

    # Case 1: non-causal, even kernel -> remove 1 trailing time step.
    mod_even = SamePad(kernel_size=4, causal=False)
    y_even = jax.block_until_ready(mod_even(x))
    assert y_even.shape == (B, C, T - 1)
    assert jnp.allclose(y_even, x[:, :, : T - 1])

    # Case 2: causal, kernel_size=3 -> remove 2 trailing time steps.
    mod_causal = SamePad(kernel_size=3, causal=True)
    y_causal = jax.block_until_ready(mod_causal(x))
    assert y_causal.shape == (B, C, T - 2)
    assert jnp.allclose(y_causal, x[:, :, : T - 2])

    # Case 3: non-causal, odd kernel -> identity (short-circuit, no kernel).
    mod_odd = SamePad(kernel_size=5, causal=False)
    y_odd = jax.block_until_ready(mod_odd(x))
    assert y_odd.shape == (B, C, T)
    assert jnp.allclose(y_odd, x)

    # Case 4: bf16 path (checks sublane-aligned row tiling, byte-budget tiles).
    x_bf16 = x.astype(jnp.bfloat16)
    y_bf16 = jax.block_until_ready(mod_causal(x_bf16))
    assert y_bf16.shape == (B, C, T - 2)
    assert jnp.array_equal(y_bf16, x_bf16[:, :, : T - 2])

    # Case 5: longer, non-multiple-of-128 time axis (ragged tail masking).
    B2, C2, T2 = 2, 4, 300
    x_long = jax.random.normal(jax.random.PRNGKey(1), (B2, C2, T2), jnp.float32)
    y_long = jax.block_until_ready(mod_causal(x_long))
    assert y_long.shape == (B2, C2, T2 - 2)
    assert jnp.allclose(y_long, x_long[:, :, : T2 - 2])

    print("KERNEL_OK")
</pallas_src>

<mosaic_0001>
module attributes {stable_mosaic.version = 11 : i64} {
  func.func @_copy_kernel(%arg0: i32, %arg1: i32, %arg2: memref<8x128xf32, #tpu.memory_space<vmem>>, %arg3: memref<8x128xf32, #tpu.memory_space<vmem>>) attributes {dimension_semantics = [#tpu.dimension_semantics<parallel>, #tpu.dimension_semantics<parallel>], iteration_bounds = array<i64: 2, 1>, scalar_prefetch = 0 : i64, scratch_operands = 0 : i64, tpu.core_type = #tpu.core_type<tc>, window_params = [{transform_indices = @transform_0, window_bounds = array<i64: 8, 128>}, {transform_indices = @transform_1, window_bounds = array<i64: 8, 128>}]} {
    %c0 = arith.constant 0 : index
    %c0_0 = arith.constant 0 : index
    %0 = vector.load %arg2[%c0, %c0_0] : memref<8x128xf32, #tpu.memory_space<vmem>>, vector<8x128xf32>
    %c0_1 = arith.constant 0 : index
    %c0_2 = arith.constant 0 : index
    %1 = vector.load %arg3[%c0_1, %c0_2] : memref<8x128xf32, #tpu.memory_space<vmem>>, vector<8x128xf32>
    tpu.vector_store %arg3[%c0_1, %c0_2], %0 {strides = array<i32>} : memref<8x128xf32, #tpu.memory_space<vmem>>, vector<8x128xf32>,
    return
  }
  func.func @transform_0(%arg0: i32, %arg1: i32) -> (i32, i32) {
    %c0_i32 = arith.constant 0 : i32
    return %arg0, %arg1 : i32, i32
  }
  func.func @transform_1(%arg0: i32, %arg1: i32) -> (i32, i32) {
    %c0_i32 = arith.constant 0 : i32
    return %arg0, %arg1 : i32, i32
  }
}

</mosaic_0001>

<llo_original>
// kernel: tpu_custom_call.1
$region0: #{tpu_custom_call.1}
  #allocation0 [shape = 'u32[]', space=smem, size = 0x4, offset = 0x4, fixed_abs, tag = 'smem constant byte address 0x4 - core index']
  #allocation1 [shape = 'u32[144,128]{1,0:T(1,128)}', space=vmem, size = 0x12000, scoped, tag = 'internal scratch']
  %s0 = inlined_call_operand.hbm [shape: f32[16,16], index: 0, kind: input, shape index: {}]
  %s1 = inlined_call_operand.hbm [shape: f32[16,15], index: 1, kind: output, shape index: {}]
  %s2 = sld [smem:[#allocation0]]
  $region41: #{tpu_custom_call.1} parent=0
    _
  %s4 = ssub.s32 1, %s2
  %s5 = scalar_select 0, %s4, %s2
  $region1: #{tpu_custom_call.1} parent=0
    #allocation2 [shape = 'u8[8192]{0}', space=vmem, size = 0x2000, scoped, tag = 'input window, operand 0']
    #allocation3 [shape = 's32[2]{0}', space=sflag, size = 0x8, scoped, tag = 'scoped memory for tpu_custom_call.1']
    #allocation4 [shape = 's32[2]{0}', space=sflag, size = 0x8, scoped, tag = 'scoped memory for tpu_custom_call.1']
    #allocation5 [shape = 'u8[8192]{0}', space=vmem, size = 0x2000, scoped, tag = 'output window, operand 0']
    %6 = vsyncpa [#allocation3], 0
    %s7 = scalar_lea.sflag [#allocation3], 1
    %8 = vsyncpa %s7, 0
    %9 = vsyncpa [#allocation4], 0
    %s10 = scalar_lea.sflag [#allocation4], 1
    %11 = vsyncpa %s10, 0
    loop: start=0, step=1, limit=4
    $region2: #{tpu_custom_call.1} parent=1 // loop_pre_header
      _
    $region3: #{tpu_custom_call.1} parent=1 // loop_header
      %s13 = sphi 0, %s17
      %p14 = scmp.ge.s32.totalorder %s13, 4
      %s20 = sphi 0, %s32
      %s21 = sphi 0, %s28
      %s22 = sphi 0, %s20
      %s23 = sphi 0, %s21
      %s24 = sphi 0, %s22
      %s25 = sphi 0, %s23
      %s37 = sphi 0, %s39
      %s40 = sphi 0, %s37
      %s41 = sphi 0, %s40
      %s57 = sphi 0, %s41
      %s65 = sphi 0, %s67
      %s68 = sphi 0, %s65
      %s69 = sphi 0, %s68
      %s85 = sphi 0, %s69
    $region4: #{tpu_custom_call.1} parent=1 // loop_header_branch
      %16 = sbr.rel (%p14) target = $region8
    $region5: #{tpu_custom_call.1} parent=1 // loop_body
      %s18 = ssub.s32 %s13, 1
      %s19 = ssub.s32 %s13, 2
      %s26 = sadd.s32 1, %s21
      %p27 = scmp.ge.s32.totalorder %s26, 1
      %s28 = scalar_select %p27, 0, %s26
      %s29 = sadd.s32 1, %s20
      %s30 = scalar_select %p27, %s29, %s20
      %p31 = scmp.ge.s32.totalorder %s30, 2
      %s32 = scalar_select %p31, 0, %s30
      %s33 = ssub.s32 %s20, %s32
      %s34 = ssub.s32 %s21, %s28
      %s35 = sor.u32 %s33, %s34
      %p36 = scmp.eq.s32.totalorder %s35, 0
      %s38 = sadd.s32 %s37, 1
      %s39 = scalar_select %p36, %s37, %s38
      %p42 = pneg %p36
      %p43 = scmp.eq.s32.totalorder %s13, 1
      %p44 = por %p42, %p43
      %p45 = scmp.ne.s32.totalorder %s37, %s40
      %p46 = scmp.eq.s32.totalorder %s13, 0
      %p47 = por %p45, %p46
      %p48 = scmp.ne.s32.totalorder %s37, %s40
      %p49 = scmp.eq.s32.totalorder %s18, 1
      %p50 = por %p48, %p49
      %p51 = scmp.ne.s32.totalorder %s40, %s41
      %p52 = scmp.eq.s32.totalorder %s18, 0
      %p53 = por %p51, %p52
      %p54 = scmp.ne.s32.totalorder %s40, %s41
      %p55 = scmp.eq.s32.totalorder %s19, 1
      %p56 = por %p54, %p55
      %p58 = scmp.ne.s32.totalorder %s41, %s57
      %p59 = scmp.eq.s32.totalorder %s19, 0
      %p60 = por %p58, %p59
      %s61 = ssub.s32 %s20, %s32
      %s62 = ssub.s32 %s21, %s28
      %s63 = sor.u32 %s61, %s62
      %p64 = scmp.eq.s32.totalorder %s63, 0
      %s66 = sadd.s32 %s65, 1
      %s67 = scalar_select %p64, %s65, %s66
      %p70 = pneg %p64
      %p71 = scmp.eq.s32.totalorder %s13, 1
      %p72 = por %p70, %p71
      %p73 = scmp.ne.s32.totalorder %s65, %s68
      %p74 = scmp.eq.s32.totalorder %s13, 0
      %p75 = por %p73, %p74
      %p76 = scmp.ne.s32.totalorder %s65, %s68
      %p77 = scmp.eq.s32.totalorder %s18, 1
      %p78 = por %p76, %p77
      %p79 = scmp.ne.s32.totalorder %s68, %s69
      %p80 = scmp.eq.s32.totalorder %s18, 0
      %p81 = por %p79, %p80
      %p82 = scmp.ne.s32.totalorder %s68, %s69
      %p83 = scmp.eq.s32.totalorder %s19, 1
      %p84 = por %p82, %p83
      %p86 = scmp.ne.s32.totalorder %s69, %s85
      %p87 = scmp.eq.s32.totalorder %s19, 0
      %p88 = por %p86, %p87
      %p89 = scmp.le.s32.totalorder 1, %s13
      %p90 = scmp.lt.s32.totalorder %s13, 3
      %p91 = pnand %p89, %p90
      %p92 = pneg %p91
      // Predicated region
      $region9: #{tpu_custom_call.1} parent=5 // pred_check
        _
      $region10: #{tpu_custom_call.1} parent=5 // pred_check_branch
        %94 = sbr.rel (%p91) target = $region12
      $region11: #{tpu_custom_call.1} parent=5 // pred_region
        %s95 = ssub.s32 %s13, 1
      $region12: #{tpu_custom_call.1} parent=5 // pred_fallthru
        _
      %p96 = scmp.lt.s32.totalorder %s13, 2
      // Predicated region
      $region13: #{tpu_custom_call.1} parent=5 // pred_check
        %p97 = pneg %p96
      $region14: #{tpu_custom_call.1} parent=5 // pred_check_branch
        %99 = sbr.rel (%p97) target = $region16
      $region15: #{tpu_custom_call.1} parent=5 // pred_region
        // Predicated region
        $region17: #{tpu_custom_call.1} parent=15 // pred_check
          %p100 = pneg %p47
        $region18: #{tpu_custom_call.1} parent=15 // pred_check_branch
          %102 = sbr.rel (%p100) target = $region20
        $region19: #{tpu_custom_call.1} parent=15 // pred_region
          %s103 = sand.u32 %s37, 1
          %s104 = scalar_lea.sflag [#allocation3], %s103
          %s105 = sand.u32 %s37, 1
          %s106 = smul.addr %s105, 8
          %s107 = scalar_lea.vmem [#allocation2], %s106
          %s109 = ssub.s32 128, 128
          %110 = vsyncadd %s104, %s109
          %s111 = sadd.s32 %s21, %s20
          %s112 = smul.addr %s111, 128
          %s113 = scalar_lea.hbm %s0, %s112
          %s115 = sshll.u32 %s107, 4
          %s116 = int_to_ptr.vmem [resolvable:$true] %s115
          %118 = dma.hbm_to_vmem [thread:$0]  %s113, 128, %s116, %s104
        $region20: #{tpu_custom_call.1} parent=15 // pred_fallthru
          _
      $region16: #{tpu_custom_call.1} parent=5 // pred_fallthru
        _
      %p119 = scmp.le.s32.totalorder 1, %s13
      %p120 = scmp.lt.s32.totalorder %s13, 3
      %p121 = pnand %p119, %p120
      %p122 = pneg %p121
      // Predicated region
      $region21: #{tpu_custom_call.1} parent=5 // pred_check
        _
      $region22: #{tpu_custom_call.1} parent=5 // pred_check_branch
        %124 = sbr.rel (%p121) target = $region24
      $region23: #{tpu_custom_call.1} parent=5 // pred_region
        %s125 = ssub.s32 %s13, 1
        %s126 = sand.u32 %s40, 1
        %s127 = scalar_lea.sflag [#allocation3], %s126
        %s128 = sand.u32 %s40, 1
        %s129 = smul.addr %s128, 8
        %s130 = scalar_lea.vmem [#allocation2], %s129
        // Predicated region
        $region25: #{tpu_custom_call.1} parent=23 // pred_check
          %p131 = pneg %p53
        $region26: #{tpu_custom_call.1} parent=23 // pred_check_branch
          %133 = sbr.rel (%p131) target = $region28
        $region27: #{tpu_custom_call.1} parent=23 // pred_region
          %134 = dma.done %s127, 128
        $region28: #{tpu_custom_call.1} parent=23 // pred_fallthru
          _
        %s135 = sand.u32 %s40, 1
        %s136 = scalar_lea.sflag [#allocation3], %s135
        %s137 = sand.u32 %s40, 1
        %s138 = smul.addr %s137, 8
        %s139 = scalar_lea.vmem [#allocation2], %s138
        %p140 = pneg %p53
        %p141 = pneg %p50
        %p142 = pneg %p81
        %p143 = pneg %p78
        %s144 = sand.u32 %s68, 1
        %s145 = scalar_lea.sflag [#allocation4], %s144
        %s146 = sand.u32 %s68, 1
        %s147 = smul.addr %s146, 8
        %s148 = scalar_lea.vmem [#allocation5], %s147
        %v149 = vld [vmem:[%s130] sm:$0xff]
        %150 = vst [vmem:[%s148] sm:$0xff] %v149
        %s151 = sand.u32 %s68, 1
        %s152 = scalar_lea.sflag [#allocation4], %s151
        %s153 = sand.u32 %s68, 1
        %s154 = smul.addr %s153, 8
        %s155 = scalar_lea.vmem [#allocation5], %s154
        // Predicated region
        $region29: #{tpu_custom_call.1} parent=23 // pred_check
          %p156 = pneg %p78
        $region30: #{tpu_custom_call.1} parent=23 // pred_check_branch
          %158 = sbr.rel (%p156) target = $region32
        $region31: #{tpu_custom_call.1} parent=23 // pred_region
          %s160 = ssub.s32 128, 128
          %161 = vsyncadd %s152, %s160
          %s162 = sadd.s32 %s23, %s22
          %s163 = smul.addr %s162, 128
          %s164 = scalar_lea.hbm %s1, %s163
          %s166 = sshll.u32 %s155, 4
          %s167 = int_to_ptr.vmem [resolvable:$true] %s166
          %169 = dma.vmem_to_hbm [thread:$0]  %s167, 128, %s164, %s152
        $region32: #{tpu_custom_call.1} parent=23 // pred_fallthru
          _
      $region24: #{tpu_custom_call.1} parent=5 // pred_fallthru
        _
      %p170 = scmp.le.s32.totalorder 2, %s13
      // Predicated region
      $region33: #{tpu_custom_call.1} parent=5 // pred_check
        %p171 = pneg %p170
      $region34: #{tpu_custom_call.1} parent=5 // pred_check_branch
        %173 = sbr.rel (%p171) target = $region36
      $region35: #{tpu_custom_call.1} parent=5 // pred_region
        %s174 = ssub.s32 %s13, 2
        // Predicated region
        $region37: #{tpu_custom_call.1} parent=35 // pred_check
          %p175 = pneg %p84
        $region38: #{tpu_custom_call.1} parent=35 // pred_check_branch
          %177 = sbr.rel (%p175) target = $region40
        $region39: #{tpu_custom_call.1} parent=35 // pred_region
          %s178 = sand.u32 %s69, 1
          %s179 = scalar_lea.sflag [#allocation4], %s178
          %s180 = sand.u32 %s69, 1
          %s181 = smul.addr %s180, 8
          %s182 = scalar_lea.vmem [#allocation5], %s181
          %183 = dma.done %s179, 128
        $region40: #{tpu_custom_call.1} parent=35 // pred_fallthru
          _
      $region36: #{tpu_custom_call.1} parent=5 // pred_fallthru
        _
    $region6: #{tpu_custom_call.1} parent=1 // loop_footer
      %s17 = sadd.s32 1, %s13
    $region7: #{tpu_custom_call.1} parent=1 // loop_footer_branch
      %12 = sbr.rel target = $region3
    $region8: #{tpu_custom_call.1} parent=1 // loop_exit
      _
    %184 = vsyncpa [#allocation3], 1
    %s185 = scalar_lea.sflag [#allocation3], 1
    %186 = vsyncpa %s185, 1
    %187 = vsyncpa [#allocation4], 1
    %s188 = scalar_lea.sflag [#allocation4], 1
    %189 = vsyncpa %s188, 1

</llo_original>
